<compile_context>
chip_gen: v5e
topology: v5e:2x2
jax: 0.10.0
libtpu: 0.0.40
codegen_flags: <defaults>
</compile_context>

<pallas_src>
import jax
import jax.numpy as jnp
from jax.experimental import pallas as pl
from jax.experimental.pallas import tpu as pltpu


# ----------------------------------------------------------------------------
# Kernel 1: Conv1d(C -> D, kernel=3, padding=1) in (B, M, D) layout with the
#           positional embedding fused.  im2col happens in VMEM (three shifted
#           views of one padded block), so no expanded HBM copy is built.
# ----------------------------------------------------------------------------
def conv1d_pos_embed(mel_nct, w_taps, bias_d, pos_md):
    """mel_nct: (B, C, M) f32.  w_taps: (3, C, D) f32 (tap-major).
    bias_d: (D,) f32.  pos_md: (M, D) f32.  Returns (B, M, D) f32.
    Conv + pos-emb run in f32 (they sit outside torch.autocast in the ref)."""
    B, C, M = mel_nct.shape
    D = w_taps.shape[-1]

    # time-major + halo pad in XLA glue (tiny); the 3x window expansion is VMEM-only
    xp = jnp.pad(jnp.transpose(mel_nct, (0, 2, 1)), ((0, 0), (1, 1), (0, 0)))

    def kernel(xp_ref, w_ref, b_ref, p_ref, o_ref):
        xw = xp_ref[0]                                    # (M+2, C) f32
        acc = jnp.dot(xw[0:M, :], w_ref[0], preferred_element_type=jnp.float32)
        acc = acc + jnp.dot(xw[1:M + 1, :], w_ref[1],
                            preferred_element_type=jnp.float32)
        acc = acc + jnp.dot(xw[2:M + 2, :], w_ref[2],
                            preferred_element_type=jnp.float32)
        o_ref[0] = acc + b_ref[...] + p_ref[...]

    return pl.pallas_call(
        kernel,
        out_shape=jax.ShapeDtypeStruct((B, M, D), jnp.float32),
        grid=(B,),
        in_specs=[
            pl.BlockSpec((1, M + 2, C), lambda i: (i, 0, 0)),
            pl.BlockSpec((3, C, D), lambda i: (0, 0, 0)),
            pl.BlockSpec((1, D), lambda i: (0, 0)),
            pl.BlockSpec((M, D), lambda i: (0, 0)),
        ],
        out_specs=pl.BlockSpec((1, M, D), lambda i: (i, 0, 0)),
        compiler_params=pltpu.CompilerParams(dimension_semantics=("parallel",)),
    )(xp, w_taps, bias_d.reshape(1, D), pos_md)


# ----------------------------------------------------------------------------
# Kernel 2: full transformer stack, fused over depth, batch-blocked so per-layer
#           weight DMA is amortized over Bt batch elements; masked-mean pooling,
#           latent projection and L2-normalize fused into the last-layer epilogue.
#
#   per layer (lucidrains non-causal encoder):
#     x = x + Wo( softmax(Q K^T / sqrt(dh) + keymask) V ) + bo     (pre-LN MHA)
#     x = x + W2( GEGLU(LN(x) W1 + b1) ) + b2                      (pre-LN FF)
#   epilogue (last layer):
#     lat = normalize( masked_mean(x) @ W_latent )
# ----------------------------------------------------------------------------
def _pick_batch_block(B):
    """Largest Bt <= 4 dividing B that keeps >= 2 grid blocks on the parallel
    batch axis (both v7x TensorCores busy) while amortizing weight DMA over Bt."""
    best = 1
    for bt in range(1, min(B, 4) + 1):
        if B % bt == 0 and (B // bt >= 2 or B < 2):
            best = bt
    return best


def _stack_vmem_limit(Bt, S, D, Di, dff, heads, L):
    """Rough upper bound on the stack kernel's VMEM footprint (2-deep weight
    buffers + resident activation + large temporaries), clamped to a range that
    is safe on v5e/v6e (128 MiB physical) and v7x (64 MiB physical)."""
    f32, bf16 = 4, 2
    N, G = Bt * S, Bt * heads
    per_layer_w = ((D * 3 * Di + Di * D + D * 2 * dff + dff * D) * bf16
                   + (6 * D + 2 * dff) * f32 + D * L * f32)
    act = 3 * Bt * S * D * f32                       # x block (x2 buffers) + scratch
    temps = (N * 3 * Di + N * 2 * dff + 2 * G * S * S + 2 * N * Di
             + heads * N * D + N * dff) * f32
    est = 2 * per_layer_w + act + temps + (2 << 20)
    return int(min(max(2 * est, 32 << 20), 48 << 20))


def transformer_stack(x, mask_b1s, stacked, wlat, heads, dim_latent,
                      batch_block=None):
    B, S, D = x.shape
    depth = stacked["wqkv"].shape[0]
    H = heads
    dh = stacked["wo"].shape[2]
    Di = H * dh
    dff = stacked["w2"].shape[1]
    L = dim_latent

    Bt = batch_block if batch_block is not None else _pick_batch_block(B)
    assert B % Bt == 0
    nb = B // Bt
    N = Bt * S              # rows fed to every MXU matmul
    G = Bt * H              # batched-attention groups (h-major within a block)

    def kernel(x_ref, m_ref,
               ln1g_r, ln1b_r, wqkv_r, wo_r, bo_r,
               ln2g_r, ln2b_r, w1_r, b1_r, w2_r, b2_r,
               wlat_r, o_ref, x_sc):
        lyr = pl.program_id(1)

        # layer 0: load the batch block into the resident VMEM scratch
        @pl.when(lyr == 0)
        def _():
            x_sc[...] = x_ref[...]

        xb = x_sc[...].reshape(N, D)                   # (N, D) f32 residual stream
        m = m_ref[...]                                 # (Bt, 1, S) f32
        # additive key mask replicated per head (h-major ordering, matches split)
        neg_g = jnp.tile((1.0 - m) * (-1e9), (H, 1, 1))           # (G, 1, S)

        def layer_norm(h, g_r, b_r):
            mu = jnp.mean(h, axis=-1, keepdims=True)
            var = jnp.mean((h - mu) ** 2, axis=-1, keepdims=True)
            return (h - mu) * jax.lax.rsqrt(var + 1e-5) * g_r[0] + b_r[0]

        # ------------------- pre-LN multi-head attention -------------------
        # (1/sqrt(dh) is pre-folded into the Q-columns of wqkv.)
        h1 = layer_norm(xb, ln1g_r, ln1b_r).astype(jnp.bfloat16)
        qkv = jnp.dot(h1, wqkv_r[0], preferred_element_type=jnp.float32)  # (N, 3Di)
        # one relayout: (N, 3Di) -> (3H, N, dh); q/k/v are leading-dim slices
        qkv = jnp.swapaxes(qkv.astype(jnp.bfloat16).reshape(N, 3 * H, dh), 0, 1)
        qh = qkv[0 * H:1 * H].reshape(G, S, dh)
        kh = qkv[1 * H:2 * H].reshape(G, S, dh)
        vh = qkv[2 * H:3 * H].reshape(G, S, dh)

        s = jnp.einsum('gqd,gkd->gqk', qh, kh,
                       preferred_element_type=jnp.float32)                # (G,S,S)
        s = s + neg_g
        s = s - jnp.max(s, axis=-1, keepdims=True)
        p = jnp.exp(s)
        p = p * pl.reciprocal(jnp.sum(p, axis=-1, keepdims=True), approx=False)
        ctx = jnp.einsum('gqk,gkd->gqd', p.astype(jnp.bfloat16), vh,
                         preferred_element_type=jnp.float32)              # (G,S,dh)
        # fold the head-concat into the output projection: wo is (H, dh, D)
        ctx_h = ctx.astype(jnp.bfloat16).reshape(H, N, dh)
        outh = jnp.einsum('hnd,hdk->hnk', ctx_h, wo_r[0],
                          preferred_element_type=jnp.float32)             # (H,N,D)
        y = xb + jnp.sum(outh, axis=0) + bo_r[0]

        # ------------------- pre-LN GEGLU feed-forward ----------------------
        h2 = layer_norm(y, ln2g_r, ln2b_r).astype(jnp.bfloat16)
        ab = jnp.dot(h2, w1_r[0], preferred_element_type=jnp.float32) + b1_r[0]
        ff = ab[:, 0:dff] * jax.nn.gelu(ab[:, dff:2 * dff], approximate=False)
        x_new = y + jnp.dot(ff.astype(jnp.bfloat16), w2_r[0],
                            preferred_element_type=jnp.float32) + b2_r[0]
        x_sc[...] = x_new.reshape(Bt, S, D)

        # ------- last-layer epilogue: masked mean -> project -> L2 norm -----
        @pl.when(lyr == pl.num_programs(1) - 1)
        def _():
            x3 = x_new.reshape(Bt, S, D)
            pooled = jnp.einsum('bks,bsd->bkd', m, x3,
                                preferred_element_type=jnp.float32)       # (Bt,1,D)
            denom = jnp.maximum(jnp.sum(m, axis=-1, keepdims=True), 1.0)  # clamp
            pooled = (pooled / denom).reshape(Bt, D)
            lat = jnp.dot(pooled, wlat_r[...],
                          preferred_element_type=jnp.float32)             # (Bt, L)
            nrm = jnp.sqrt(jnp.sum(lat * lat, axis=-1, keepdims=True))
            o_ref[0] = lat / jnp.maximum(nrm, 1e-12)

    wspec = lambda shape: pl.BlockSpec(shape, lambda b, l: (l, 0, 0))

    out = pl.pallas_call(
        kernel,
        out_shape=jax.ShapeDtypeStruct((nb, Bt, L), jnp.float32),
        grid=(nb, depth),
        in_specs=[
            pl.BlockSpec((Bt, S, D), lambda b, l: (b, 0, 0)),
            pl.BlockSpec((Bt, 1, S), lambda b, l: (b, 0, 0)),
            wspec((1, 1, D)), wspec((1, 1, D)),
            wspec((1, D, 3 * Di)),
            pl.BlockSpec((1, H, dh, D), lambda b, l: (l, 0, 0, 0)),
            wspec((1, 1, D)),
            wspec((1, 1, D)), wspec((1, 1, D)),
            wspec((1, D, 2 * dff)), wspec((1, 1, 2 * dff)),
            wspec((1, dff, D)), wspec((1, 1, D)),
            pl.BlockSpec((D, L), lambda b, l: (0, 0)),
        ],
        out_specs=pl.BlockSpec((1, Bt, L), lambda b, l: (b, 0, 0)),
        scratch_shapes=[pltpu.VMEM((Bt, S, D), jnp.float32)],
        compiler_params=pltpu.CompilerParams(
            dimension_semantics=("parallel", "arbitrary"),
            vmem_limit_bytes=_stack_vmem_limit(Bt, S, D, Di, dff, H, L)),
    )(x.astype(jnp.float32), mask_b1s.astype(jnp.float32),
      stacked["ln1g"], stacked["ln1b"], stacked["wqkv"], stacked["wo"],
      stacked["bo"], stacked["ln2g"], stacked["ln2b"], stacked["w1"],
      stacked["b1"], stacked["w2"], stacked["b2"], wlat)
    return out.reshape(B, L)


# ----------------------------------------------------------------------------
# Parameter construction (deterministic, synthetic weights; stacked over depth)
# ----------------------------------------------------------------------------
def init_transformer_params(key, depth, D, heads):
    """wqkv columns are ordered (3, heads, dh); the 1/sqrt(dh) attention scale
    is folded into the Q-columns in f32 before the bf16 cast; wo is stored
    head-major as (depth, heads, dh, D) so the head-concat folds into the
    output projection inside the kernel."""
    dh = D // heads
    Di = dh * heads
    dff = 4 * D
    ks = jax.random.split(key, 4)
    s = 0.02
    wqkv = jax.random.normal(ks[0], (depth, D, 3 * Di), jnp.float32) * s
    wqkv = wqkv.at[:, :, :Di].multiply(dh ** -0.5)       # fold attention scale
    return {
        "ln1g": jnp.ones((depth, 1, D), jnp.float32),
        "ln1b": jnp.zeros((depth, 1, D), jnp.float32),
        "wqkv": wqkv.astype(jnp.bfloat16),
        "wo":   (jax.random.normal(ks[1], (depth, heads, dh, D)) * s).astype(jnp.bfloat16),
        "bo":   jnp.zeros((depth, 1, D), jnp.float32),
        "ln2g": jnp.ones((depth, 1, D), jnp.float32),
        "ln2b": jnp.zeros((depth, 1, D), jnp.float32),
        "w1":   (jax.random.normal(ks[2], (depth, D, 2 * dff)) * s).astype(jnp.bfloat16),
        "b1":   jnp.zeros((depth, 1, 2 * dff), jnp.float32),
        "w2":   (jax.random.normal(ks[3], (depth, dff, D)) * s).astype(jnp.bfloat16),
        "b2":   jnp.zeros((depth, 1, D), jnp.float32),
    }


def conv_weight_to_taps(w_dck):
    """PyTorch Conv1d weight (D, C, 3) -> tap-major (3, C, D) f32."""
    return jnp.stack([w_dck[:, :, k].T for k in range(3)], axis=0).astype(jnp.float32)


# ----------------------------------------------------------------------------
# Forward pass (eval mode: self.training == False -> all-ones masks)
# ----------------------------------------------------------------------------
def mel_text_clip_forward(text, text_lengths, mel, wav_lengths, params, cfg,
                          return_loss=False):
    # TODO(synk): dynamic max-length cropping (host-synced int(max(lengths)))
    # replaced by fixed-length buckets; eval-mode masks are all-ones so results
    # match inputs padded to the bucket length.
    del text_lengths, wav_lengths
    B, T = text.shape
    M = mel.shape[2]
    heads = cfg["heads"]
    L = cfg["dim_latent"]

    text_mask = jnp.ones((B, 1, T), jnp.float32)
    voice_mask = jnp.ones((B, 1, M), jnp.float32)

    # token-embedding gather + text pos-emb: XLA glue; speech pos-emb add is
    # fused into the conv kernel.
    text_emb = jnp.take(params["text_emb"], text, axis=0)
    text_emb = text_emb + params["text_pos_emb"][:T][None, :, :]
    speech_emb = conv1d_pos_embed(mel, params["speech_enc_w"],
                                  params["speech_enc_b"],
                                  params["speech_pos_emb"][:M])

    # fused transformer stacks (pool/project/normalize fused in the epilogue)
    text_latents = transformer_stack(text_emb, text_mask, params["text_layers"],
                                     params["to_text_latent"], heads, L)
    speech_latents = transformer_stack(speech_emb, voice_mask,
                                       params["speech_layers"],
                                       params["to_speech_latent"], heads, L)

    temp = jnp.exp(params["temperature"])
    if not return_loss:
        # einsum('n d, n d -> n') * exp(temperature): tiny, plain JAX glue
        return jnp.sum(text_latents * speech_latents, axis=-1) * temp

    sim = (text_latents @ speech_latents.T) * temp
    labels = jnp.arange(B)

    def ce(logits):
        lse = jax.scipy.special.logsumexp(logits, axis=-1)
        return jnp.mean(lse - logits[jnp.arange(B), labels])

    return (ce(sim) + ce(sim.T)) / 2


if __name__ == "__main__":
    # small, lane-dense synthetic configuration consistent with the module
    # (dh = dim/heads = 128 keeps every in-kernel reshape tile-aligned)
    cfg = dict(
        dim=256,            # dim_text = dim_speech
        dim_latent=256,
        heads=2,
        depth=2,
        num_text_tokens=256,
        text_seq_len=16,
        num_speech_tokens=64,
        speech_seq_len=16,
        mel_channels=80,    # fixed by Conv1d(80, dim_speech, 3, padding=1)
        mel_compression=256,
    )

    key = jax.random.PRNGKey(0)
    ks = jax.random.split(key, 10)

    D = cfg["dim"]
    C = cfg["mel_channels"]
    L = cfg["dim_latent"]

    conv_w = jax.random.normal(ks[3], (D, C, 3), jnp.float32) * 0.02
    params = {
        "text_emb": (jax.random.normal(ks[0], (cfg["num_text_tokens"], D)) * 0.02).astype(jnp.float32),
        "text_pos_emb": (jax.random.normal(ks[1], (cfg["text_seq_len"], D)) * 0.02).astype(jnp.float32),
        "speech_pos_emb": (jax.random.normal(ks[2], (cfg["num_speech_tokens"], D)) * 0.02).astype(jnp.float32),
        "speech_enc_w": conv_weight_to_taps(conv_w),
        "speech_enc_b": jnp.zeros((D,), jnp.float32),
        "to_text_latent": (jax.random.normal(ks[4], (D, L)) * 0.02).astype(jnp.float32),
        "to_speech_latent": (jax.random.normal(ks[5], (D, L)) * 0.02).astype(jnp.float32),
        "temperature": jnp.float32(1.0),
        "text_layers": init_transformer_params(ks[6], cfg["depth"], D, cfg["heads"]),
        "speech_layers": init_transformer_params(ks[7], cfg["depth"], D, cfg["heads"]),
    }

    # inputs (B=4 so the stack runs with Bt=2 batch blocks on a parallel axis)
    B = 4
    text = jax.random.randint(ks[8], (B, cfg["text_seq_len"]), 0,
                              cfg["num_text_tokens"], dtype=jnp.int32)
    text_lengths = jnp.full((B,), cfg["text_seq_len"], jnp.int32)
    mel = jax.random.normal(ks[9], (B, C, cfg["speech_seq_len"]), jnp.float32)
    wav_lengths = jnp.full((B,), cfg["speech_seq_len"] * cfg["mel_compression"],
                           jnp.int32)

    sim = mel_text_clip_forward(text, text_lengths, mel, wav_lengths, params, cfg,
                                return_loss=False)
    sim = jax.block_until_ready(sim)
    assert sim.shape == (B,)
    assert bool(jnp.all(jnp.isfinite(sim)))
    print("KERNEL_OK")
</pallas_src>

<mosaic_0001>
module attributes {stable_mosaic.version = 11 : i64} {
  func.func @kernel(%arg0: i32, %arg1: memref<1x18x80xf32, #tpu.memory_space<vmem>>, %arg2: memref<3x80x256xf32, #tpu.memory_space<vmem>>, %arg3: memref<1x256xf32, #tpu.memory_space<vmem>>, %arg4: memref<16x256xf32, #tpu.memory_space<vmem>>, %arg5: memref<1x16x256xf32, #tpu.memory_space<vmem>>) attributes {dimension_semantics = [#tpu.dimension_semantics<parallel>], iteration_bounds = array<i64: 4>, scalar_prefetch = 0 : i64, scratch_operands = 0 : i64, tpu.core_type = #tpu.core_type<tc>, window_params = [{transform_indices = @transform_0, window_bounds = array<i64: 1, 18, 80>}, {pipeline_mode = #tpu.pipeline_mode<synchronous>, transform_indices = @transform_1, window_bounds = array<i64: 3, 80, 256>}, {pipeline_mode = #tpu.pipeline_mode<synchronous>, transform_indices = @transform_2, window_bounds = array<i64: 1, 256>}, {pipeline_mode = #tpu.pipeline_mode<synchronous>, transform_indices = @transform_3, window_bounds = array<i64: 16, 256>}, {transform_indices = @transform_4, window_bounds = array<i64: 1, 16, 256>}]} {
    %c0 = arith.constant 0 : index
    %c0_0 = arith.constant 0 : index
    %c0_1 = arith.constant 0 : index
    %0 = vector.load %arg1[%c0, %c0_0, %c0_1] : memref<1x18x80xf32, #tpu.memory_space<vmem>>, vector<1x18x80xf32>
    %1 = vector.shape_cast %0 : vector<1x18x80xf32> to vector<18x80xf32>
    %2 = vector.extract_strided_slice %1 {offsets = [0, 0], sizes = [16, 80], strides = [1, 1]} : vector<18x80xf32> to vector<16x80xf32>
    %c0_2 = arith.constant 0 : index
    %c0_3 = arith.constant 0 : index
    %c0_4 = arith.constant 0 : index
    %3 = vector.load %arg2[%c0_2, %c0_3, %c0_4] : memref<3x80x256xf32, #tpu.memory_space<vmem>>, vector<1x80x256xf32>
    %4 = vector.shape_cast %3 : vector<1x80x256xf32> to vector<80x256xf32>
    %cst = arith.constant dense<0.000000e+00> : vector<16x256xf32>
    %5 = tpu.matmul %2, %4, %cst {dimension_numbers = #tpu.dot_dimension_numbers<[1], [0], [0], [1], [0, 0, 1, 1], [], []>} : vector<16x80xf32>, vector<80x256xf32>, vector<16x256xf32> -> vector<16x256xf32>
    %6 = vector.extract_strided_slice %1 {offsets = [1, 0], sizes = [16, 80], strides = [1, 1]} : vector<18x80xf32> to vector<16x80xf32>
    %c1 = arith.constant 1 : index
    %c0_5 = arith.constant 0 : index
    %c0_6 = arith.constant 0 : index
    %7 = vector.load %arg2[%c1, %c0_5, %c0_6] : memref<3x80x256xf32, #tpu.memory_space<vmem>>, vector<1x80x256xf32>
    %8 = vector.shape_cast %7 : vector<1x80x256xf32> to vector<80x256xf32>
    %cst_7 = arith.constant dense<0.000000e+00> : vector<16x256xf32>
    %9 = tpu.matmul %6, %8, %cst_7 {dimension_numbers = #tpu.dot_dimension_numbers<[1], [0], [0], [1], [0, 0, 1, 1], [], []>} : vector<16x80xf32>, vector<80x256xf32>, vector<16x256xf32> -> vector<16x256xf32>
    %10 = arith.addf %5, %9 : vector<16x256xf32>
    %11 = vector.extract_strided_slice %1 {offsets = [2, 0], sizes = [16, 80], strides = [1, 1]} : vector<18x80xf32> to vector<16x80xf32>
    %c2 = arith.constant 2 : index
    %c0_8 = arith.constant 0 : index
    %c0_9 = arith.constant 0 : index
    %12 = vector.load %arg2[%c2, %c0_8, %c0_9] : memref<3x80x256xf32, #tpu.memory_space<vmem>>, vector<1x80x256xf32>
    %13 = vector.shape_cast %12 : vector<1x80x256xf32> to vector<80x256xf32>
    %cst_10 = arith.constant dense<0.000000e+00> : vector<16x256xf32>
    %14 = tpu.matmul %11, %13, %cst_10 {dimension_numbers = #tpu.dot_dimension_numbers<[1], [0], [0], [1], [0, 0, 1, 1], [], []>} : vector<16x80xf32>, vector<80x256xf32>, vector<16x256xf32> -> vector<16x256xf32>
    %15 = arith.addf %10, %14 : vector<16x256xf32>
    %c0_11 = arith.constant 0 : index
    %c0_12 = arith.constant 0 : index
    %16 = vector.load %arg3[%c0_11, %c0_12] : memref<1x256xf32, #tpu.memory_space<vmem>>, vector<1x256xf32>
    %17 = vector.broadcast %16 : vector<1x256xf32> to vector<16x256xf32>
    %18 = arith.addf %15, %17 : vector<16x256xf32>
    %c0_13 = arith.constant 0 : index
    %c0_14 = arith.constant 0 : index
    %19 = vector.load %arg4[%c0_13, %c0_14] : memref<16x256xf32, #tpu.memory_space<vmem>>, vector<16x256xf32>
    %20 = arith.addf %18, %19 : vector<16x256xf32>
    %c0_15 = arith.constant 0 : index
    %c0_16 = arith.constant 0 : index
    %c0_17 = arith.constant 0 : index
    %21 = vector.load %arg5[%c0_15, %c0_16, %c0_17] : memref<1x16x256xf32, #tpu.memory_space<vmem>>, vector<1x16x256xf32>
    %22 = vector.shape_cast %21 : vector<1x16x256xf32> to vector<16x256xf32>
    %23 = vector.shape_cast %20 : vector<16x256xf32> to vector<1x16x256xf32>
    tpu.vector_store %arg5[%c0_15, %c0_16, %c0_17], %23 {strides = array<i32>} : memref<1x16x256xf32, #tpu.memory_space<vmem>>, vector<1x16x256xf32>,
    return
  }
  func.func @transform_0(%arg0: i32) -> (i32, i32, i32) {
    %c0_i32 = arith.constant 0 : i32
    %c0_i32_0 = arith.constant 0 : i32
    %c0_i32_1 = arith.constant 0 : i32
    return %arg0, %c0_i32, %c0_i32_0 : i32, i32, i32
  }
  func.func @transform_1(%arg0: i32) -> (i32, i32, i32) {
    %c0_i32 = arith.constant 0 : i32
    %c0_i32_0 = arith.constant 0 : i32
    %c0_i32_1 = arith.constant 0 : i32
    %c0_i32_2 = arith.constant 0 : i32
    return %c0_i32, %c0_i32_0, %c0_i32_1 : i32, i32, i32
  }
  func.func @transform_2(%arg0: i32) -> (i32, i32) {
    %c0_i32 = arith.constant 0 : i32
    %c0_i32_0 = arith.constant 0 : i32
    %c0_i32_1 = arith.constant 0 : i32
    return %c0_i32, %c0_i32_0 : i32, i32
  }
  func.func @transform_3(%arg0: i32) -> (i32, i32) {
    %c0_i32 = arith.constant 0 : i32
    %c0_i32_0 = arith.constant 0 : i32
    %c0_i32_1 = arith.constant 0 : i32
    return %c0_i32, %c0_i32_0 : i32, i32
  }
  func.func @transform_4(%arg0: i32) -> (i32, i32, i32) {
    %c0_i32 = arith.constant 0 : i32
    %c0_i32_0 = arith.constant 0 : i32
    %c0_i32_1 = arith.constant 0 : i32
    return %arg0, %c0_i32, %c0_i32_0 : i32, i32, i32
  }
}

</mosaic_0001>

<llo_original>
// kernel: tpu_custom_call.1
$region0: #{tpu_custom_call.1}
  #allocation0 [shape = 'u32[]', space=smem, size = 0x4, offset = 0x4, fixed_abs, tag = 'smem constant byte address 0x4 - core index']
  #allocation1 [shape = 'u32[72,128]{1,0:T(1,128)}', space=vmem, size = 0x9000, scoped, tag = 'internal scratch']
  %s0 = inlined_call_operand.vmem [shape: f32[4,18,80], index: 0, kind: input, shape index: {}]
  %s1 = inlined_call_operand.hbm [shape: f32[3,80,256], index: 1, kind: input, shape index: {}]
  %s2 = inlined_call_operand.vmem [shape: f32[1,256], index: 2, kind: input, shape index: {}]
  %s3 = inlined_call_operand.vmem [shape: f32[16,256], index: 3, kind: input, shape index: {}]
  %s4 = inlined_call_operand.hbm [shape: f32[4,16,256], index: 4, kind: output, shape index: {}]
  %s5 = sld [smem:[#allocation0]]
  $region53: #{tpu_custom_call.1} parent=0
    _
  %s7 = ssub.s32 1, %s5
  %s8 = scalar_select 0, %s7, %s5
  $region1: #{tpu_custom_call.1} parent=0
    #allocation2 [shape = 'u8[245760]{0}', space=vmem, size = 0x3c000, scoped, tag = 'input window, operand 1, single buffered']
    #allocation3 [shape = 's32[2]{0}', space=sflag, size = 0x8, scoped, tag = 'scoped memory for tpu_custom_call.1']
    #allocation4 [shape = 's32[2]{0}', space=sflag, size = 0x8, scoped, tag = 'scoped memory for tpu_custom_call.1']
    #allocation5 [shape = 'u8[32768]{0}', space=vmem, size = 0x8000, scoped, tag = 'output window, operand 0']
    %9 = vsyncpa [#allocation3], 0
    %10 = vsyncpa [#allocation4], 0
    %s11 = scalar_lea.sflag [#allocation4], 1
    %12 = vsyncpa %s11, 0
    loop: start=0, step=1, limit=6
    $region2: #{tpu_custom_call.1} parent=1 // loop_pre_header
      _
    $region3: #{tpu_custom_call.1} parent=1 // loop_header
      %s14 = sphi 0, %s18
      %p15 = scmp.ge.s32.totalorder %s14, 6
      %s24 = sphi 0, %s26
      %s27 = sphi 0, %s24
      %s28 = sphi 0, %s27
      %s44 = sphi 0, %s28
      %s48 = sphi 0, %s48
      %s50 = sphi 0, %s48
      %s51 = sphi 0, %s50
      %s65 = sphi 0, %s51
      %s69 = sphi 0, %s69
      %s71 = sphi 0, %s69
      %s72 = sphi 0, %s71
      %s86 = sphi 0, %s72
      %s90 = sphi 0, %s90
      %s92 = sphi 0, %s90
      %s93 = sphi 0, %s92
      %s107 = sphi 0, %s93
      %s113 = sphi 0, %s115
      %s116 = sphi 0, %s113
      %s117 = sphi 0, %s116
      %s133 = sphi 0, %s117
    $region4: #{tpu_custom_call.1} parent=1 // loop_header_branch
      %17 = sbr.rel (%p15) target = $region8
    $region5: #{tpu_custom_call.1} parent=1 // loop_body
      %s19 = ssub.s32 %s14, 1
      %s20 = ssub.s32 %s14, 2
      %s21 = sadd.s32 %s14, 1
      %s22 = ssub.s32 %s14, %s21
      %p23 = scmp.eq.s32.totalorder %s22, 0
      %s25 = sadd.s32 %s24, 1
      %s26 = scalar_select %p23, %s24, %s25
      %p29 = pneg %p23
      %p30 = scmp.eq.s32.totalorder %s14, 3
      %p31 = por %p29, %p30
      %p32 = scmp.ne.s32.totalorder %s24, %s27
      %p33 = scmp.eq.s32.totalorder %s14, 0
      %p34 = por %p32, %p33
      %p35 = scmp.ne.s32.totalorder %s24, %s27
      %p36 = scmp.eq.s32.totalorder %s19, 3
      %p37 = por %p35, %p36
      %p38 = scmp.ne.s32.totalorder %s27, %s28
      %p39 = scmp.eq.s32.totalorder %s19, 0
      %p40 = por %p38, %p39
      %p41 = scmp.ne.s32.totalorder %s27, %s28
      %p42 = scmp.eq.s32.totalorder %s20, 3
      %p43 = por %p41, %p42
      %p45 = scmp.ne.s32.totalorder %s28, %s44
      %p46 = scmp.eq.s32.totalorder %s20, 0
      %p47 = por %p45, %p46
      %s49 = sadd.s32 %s48, 1
      %p52 = scmp.eq.s32.totalorder %s14, 3
      %p53 = scmp.ne.s32.totalorder %s48, %s50
      %p54 = scmp.eq.s32.totalorder %s14, 0
      %p55 = por %p53, %p54
      %p56 = scmp.ne.s32.totalorder %s48, %s50
      %p57 = scmp.eq.s32.totalorder %s19, 3
      %p58 = por %p56, %p57
      %p59 = scmp.ne.s32.totalorder %s50, %s51
      %p60 = scmp.eq.s32.totalorder %s19, 0
      %p61 = por %p59, %p60
      %p62 = scmp.ne.s32.totalorder %s50, %s51
      %p63 = scmp.eq.s32.totalorder %s20, 3
      %p64 = por %p62, %p63
      %p66 = scmp.ne.s32.totalorder %s51, %s65
      %p67 = scmp.eq.s32.totalorder %s20, 0
      %p68 = por %p66, %p67
      %s70 = sadd.s32 %s69, 1
      %p73 = scmp.eq.s32.totalorder %s14, 3
      %p74 = scmp.ne.s32.totalorder %s69, %s71
      %p75 = scmp.eq.s32.totalorder %s14, 0
      %p76 = por %p74, %p75
      %p77 = scmp.ne.s32.totalorder %s69, %s71
      %p78 = scmp.eq.s32.totalorder %s19, 3
      %p79 = por %p77, %p78
      %p80 = scmp.ne.s32.totalorder %s71, %s72
      %p81 = scmp.eq.s32.totalorder %s19, 0
      %p82 = por %p80, %p81
      %p83 = scmp.ne.s32.totalorder %s71, %s72
      %p84 = scmp.eq.s32.totalorder %s20, 3
      %p85 = por %p83, %p84
      %p87 = scmp.ne.s32.totalorder %s72, %s86
      %p88 = scmp.eq.s32.totalorder %s20, 0
      %p89 = por %p87, %p88
      %s91 = sadd.s32 %s90, 1
      %p94 = scmp.eq.s32.totalorder %s14, 3
      %p95 = scmp.ne.s32.totalorder %s90, %s92
      %p96 = scmp.eq.s32.totalorder %s14, 0
      %p97 = por %p95, %p96
      %p98 = scmp.ne.s32.totalorder %s90, %s92
      %p99 = scmp.eq.s32.totalorder %s19, 3
      %p100 = por %p98, %p99
      %p101 = scmp.ne.s32.totalorder %s92, %s93
      %p102 = scmp.eq.s32.totalorder %s19, 0
      %p103 = por %p101, %p102
      %p104 = scmp.ne.s32.totalorder %s92, %s93
      %p105 = scmp.eq.s32.totalorder %s20, 3
      %p106 = por %p104, %p105
      %p108 = scmp.ne.s32.totalorder %s93, %s107
      %p109 = scmp.eq.s32.totalorder %s20, 0
      %p110 = por %p108, %p109
      %s111 = ssub.s32 %s14, %s21
      %p112 = scmp.eq.s32.totalorder %s111, 0
      %s114 = sadd.s32 %s113, 1
      %s115 = scalar_select %p112, %s113, %s114
      %p118 = pneg %p112
      %p119 = scmp.eq.s32.totalorder %s14, 3
      %p120 = por %p118, %p119
      %p121 = scmp.ne.s32.totalorder %s113, %s116
      %p122 = scmp.eq.s32.totalorder %s14, 0
      %p123 = por %p121, %p122
      %p124 = scmp.ne.s32.totalorder %s113, %s116
      %p125 = scmp.eq.s32.totalorder %s19, 3
      %p126 = por %p124, %p125
      %p127 = scmp.ne.s32.totalorder %s116, %s117
      %p128 = scmp.eq.s32.totalorder %s19, 0
      %p129 = por %p127, %p128
      %p130 = scmp.ne.s32.totalorder %s116, %s117
      %p131 = scmp.eq.s32.totalorder %s20, 3
      %p132 = por %p130, %p131
      %p134 = scmp.ne.s32.totalorder %s117, %s133
      %p135 = scmp.eq.s32.totalorder %s20, 0
      %p136 = por %p134, %p135
      %p137 = scmp.le.s32.totalorder 1, %s14
      %p138 = scmp.lt.s32.totalorder %s14, 5
      %p139 = pnand %p137, %p138
      %p140 = pneg %p139
      // Predicated region
      $region9: #{tpu_custom_call.1} parent=5 // pred_check
        _
      $region10: #{tpu_custom_call.1} parent=5 // pred_check_branch
        %142 = sbr.rel (%p139) target = $region12
      $region11: #{tpu_custom_call.1} parent=5 // pred_region
        %s143 = ssub.s32 %s14, 1
        // Predicated region
        $region13: #{tpu_custom_call.1} parent=11 // pred_check
          %p144 = pneg %p61
        $region14: #{tpu_custom_call.1} parent=11 // pred_check_branch
          %146 = sbr.rel (%p144) target = $region16
        $region15: #{tpu_custom_call.1} parent=11 // pred_region
          %148 = vsyncadd [#allocation3], 0
          %s149 = sshll.u32 %s1, 4
          %s150 = int_to_ptr.hbm [resolvable:$true] %s149
          %s151 = sshll.u32 [#allocation2], 4
          %s152 = int_to_ptr.vmem [resolvable:$true] %s151
          %157 = dma.hbm_to_vmem [thread:$0]  %s150, 7680, %s152, [#allocation3], 256, 256, 16
        $region16: #{tpu_custom_call.1} parent=11 // pred_fallthru
          _
        // Predicated region
        $region17: #{tpu_custom_call.1} parent=11 // pred_check
          %p158 = pneg %p82
        $region18: #{tpu_custom_call.1} parent=11 // pred_check_branch
          %160 = sbr.rel (%p158) target = $region20
        $region19: #{tpu_custom_call.1} parent=11 // pred_region
          _
        $region20: #{tpu_custom_call.1} parent=11 // pred_fallthru
          _
        // Predicated region
        $region21: #{tpu_custom_call.1} parent=11 // pred_check
          %p161 = pneg %p103
        $region22: #{tpu_custom_call.1} parent=11 // pred_check_branch
          %163 = sbr.rel (%p161) target = $region24
        $region23: #{tpu_custom_call.1} parent=11 // pred_region
          _
        $region24: #{tpu_custom_call.1} parent=11 // pred_fallthru
          _
      $region12: #{tpu_custom_call.1} parent=5 // pred_fallthru
        _
      %p164 = scmp.lt.s32.totalorder %s14, 4
      // Predicated region
      $region25: #{tpu_custom_call.1} parent=5 // pred_check
        %p165 = pneg %p164
      $region26: #{tpu_custom_call.1} parent=5 // pred_check_branch
        %167 = sbr.rel (%p165) target = $region28
      $region27: #{tpu_custom_call.1} parent=5 // pred_region
        // Predicated region
        $region29: #{tpu_custom_call.1} parent=27 // pred_check
          %p168 = pneg %p34
        $region30: #{tpu_custom_call.1} parent=27 // pred_check_branch
          %170 = sbr.rel (%p168) target = $region32
        $region31: #{tpu_custom_call.1} parent=27 // pred_region
          %p171 = scmp.lt.s32.totalorder %s14, 3
          %s172 = scalar_select %p171, %s14, 3
          %s173 = smul.addr %s172, 3
          %s174 = smul.addr %s173, 8
          %s175 = scalar_lea.vmem %s0, %s174
        $region32: #{tpu_custom_call.1} parent=27 // pred_fallthru
          _
      $region28: #{tpu_custom_call.1} parent=5 // pred_fallthru
        _
      %p176 = scmp.le.s32.totalorder 1, %s14
      %p177 = scmp.lt.s32.totalorder %s14, 5
      %p178 = pnand %p176, %p177
      %p179 = pneg %p178
      // Predicated region
      $region33: #{tpu_custom_call.1} parent=5 // pred_check
        _
      $region34: #{tpu_custom_call.1} parent=5 // pred_check_branch
        %181 = sbr.rel (%p178) target = $region36
      $region35: #{tpu_custom_call.1} parent=5 // pred_region
        %s182 = ssub.s32 %s14, 1
        // Predicated region
        $region37: #{tpu_custom_call.1} parent=35 // pred_check
          %p183 = pneg %p61
        $region38: #{tpu_custom_call.1} parent=35 // pred_check_branch
          %185 = sbr.rel (%p183) target = $region40
        $region39: #{tpu_custom_call.1} parent=35 // pred_region
          %187 = dma.done [#allocation3], 7680
        $region40: #{tpu_custom_call.1} parent=35 // pred_fallthru
          _
        %p188 = scmp.lt.s32.totalorder %s19, 3
        %s189 = scalar_select %p188, %s19, 3
        %s190 = smul.addr %s189, 3
        %s191 = smul.addr %s190, 8
        %s192 = scalar_lea.vmem %s0, %s191
        %p193 = pneg %p40
        %p194 = pneg %p37
        %p195 = pneg %p61
        %p196 = pneg %p58
        %p197 = pneg %p82
        %p198 = pneg %p79
        %p199 = pneg %p103
        %p200 = pneg %p100
        %p201 = pneg %p129
        %p202 = pneg %p126
        %s203 = sand.u32 %s116, 1
        %s204 = scalar_lea.sflag [#allocation4], %s203
        %s205 = sand.u32 %s116, 1
        %s206 = smul.addr %s205, 32
        %s207 = scalar_lea.vmem [#allocation5], %s206
        %p208 = scmp.lt.s32.totalorder %s19, 3
        %s209 = scalar_select %p208, %s19, 3
        %s210 = smul.addr %s209, 3
        %s211 = smul.addr %s210, 8
        %s212 = scalar_lea.vmem %s0, %s211
        %v213 = vld [vmem:[%s212] sm:$0xff]
        %v214 = vld [vmem:[%s212 + $0x8] sm:$0xff]
        %v215 = vld [vmem:[%s212 + $0x10] sm:$0x3]
        %v216 = vld [vmem:[#allocation2] sm:$0xff]
        %v217 = vld [vmem:[#allocation2 + $0x8] sm:$0xff]
        %v218 = vld [vmem:[#allocation2 + $0x10] sm:$0xff]
        %v219 = vld [vmem:[#allocation2 + $0x18] sm:$0xff]
        %v220 = vld [vmem:[#allocation2 + $0x20] sm:$0xff]
        %v221 = vld [vmem:[#allocation2 + $0x28] sm:$0xff]
        %v222 = vld [vmem:[#allocation2 + $0x30] sm:$0xff]
        %v223 = vld [vmem:[#allocation2 + $0x38] sm:$0xff]
        %v224 = vld [vmem:[#allocation2 + $0x40] sm:$0xff]
        %v225 = vld [vmem:[#allocation2 + $0x48] sm:$0xff]
        %v226 = vld [vmem:[#allocation2 + $0x50] sm:$0xff]
        %v227 = vld [vmem:[#allocation2 + $0x58] sm:$0xff]
        %v228 = vld [vmem:[#allocation2 + $0x60] sm:$0xff]
        %v229 = vld [vmem:[#allocation2 + $0x68] sm:$0xff]
        %v230 = vld [vmem:[#allocation2 + $0x70] sm:$0xff]
        %v231 = vld [vmem:[#allocation2 + $0x78] sm:$0xff]
        %v232 = vld [vmem:[#allocation2 + $0x80] sm:$0xff]
        %v233 = vld [vmem:[#allocation2 + $0x88] sm:$0xff]
        %v234 = vld [vmem:[#allocation2 + $0x90] sm:$0xff]
        %v235 = vld [vmem:[#allocation2 + $0x98] sm:$0xff]
        %s236 = scalar_lea.vmem [#allocation2], 160
        %v237 = vld [vmem:[%s236] sm:$0xff]
        %v238 = vld [vmem:[%s236 + $0x8] sm:$0xff]
        %v239 = vld [vmem:[%s236 + $0x10] sm:$0xff]
        %v240 = vld [vmem:[%s236 + $0x18] sm:$0xff]
        %v241 = vld [vmem:[%s236 + $0x20] sm:$0xff]
        %v242 = vld [vmem:[%s236 + $0x28] sm:$0xff]
        %v243 = vld [vmem:[%s236 + $0x30] sm:$0xff]
        %v244 = vld [vmem:[%s236 + $0x38] sm:$0xff]
        %v245 = vld [vmem:[%s236 + $0x40] sm:$0xff]
        %v246 = vld [vmem:[%s236 + $0x48] sm:$0xff]
        %v247 = vld [vmem:[%s236 + $0x50] sm:$0xff]
        %v248 = vld [vmem:[%s236 + $0x58] sm:$0xff]
        %v249 = vld [vmem:[%s236 + $0x60] sm:$0xff]
        %v250 = vld [vmem:[%s236 + $0x68] sm:$0xff]
        %v251 = vld [vmem:[%s236 + $0x70] sm:$0xff]
        %v252 = vld [vmem:[%s236 + $0x78] sm:$0xff]
        %v253 = vld [vmem:[%s236 + $0x80] sm:$0xff]
        %v254 = vld [vmem:[%s236 + $0x88] sm:$0xff]
        %v255 = vld [vmem:[%s236 + $0x90] sm:$0xff]
        %v256 = vld [vmem:[%s236 + $0x98] sm:$0xff]
        %vm260 = vcmask 1046528
        %v261 = vrot.slane %v213, 1
        %v262 = vrot.slane %v214, 1
        %v263 = vsel %vm260, %v261, %v262
        %v264 = vrot.slane %v215, 1
        %v265 = vsel %vm260, %v262, %v264
        %vm266 = vcmask 654336
        %v267 = vsel %vm266, %v263, 0
        %v269 = vsel %vm266, %v265, 0
        %271 = vmatpush.msra.mxu0 0.0
        %272 = vmatpush.msra.mxu0 0.0
        %273 = vmatpush.msra.mxu0 0.0
        %274 = vmatpush.msra.mxu0 0.0
        %275 = vmatpush.msra.mxu0 0.0
        %276 = vmatpush.msra.mxu0 0.0
        %277 = vmatpush.msra.mxu0 %v255
        %278 = vmatpush.msra.mxu0 %v253
        %279 = vmatpush.msra.mxu0 %v251
        %280 = vmatpush.msra.mxu0 %v249
        %281 = vmatpush.msra.mxu0 %v247
        %282 = vmatpush.msra.mxu0 %v245
        %283 = vmatpush.msra.mxu0 %v243
        %284 = vmatpush.msra.mxu0 %v241
        %285 = vmatpush.msra.mxu0 %v239
        %286 = vmatpush.msra.mxu0 %v237
        %287 = vmatmul.f32.gmra.mxu0 %v267
        %v288 = vpop.f32.mrf.mxu0
        %v289 = vadd.f32 0.0, %v288
        %290 = vmatmul.f32.gmra.mxu0 %v269
        %v291 = vpop.f32.mrf.mxu0
        %v292 = vadd.f32 0.0, %v291
        %293 = vdwg.mxu0
        %294 = vmatpush.msra.mxu0 0.0
        %295 = vmatpush.msra.mxu0 0.0
        %296 = vmatpush.msra.mxu0 0.0
        %297 = vmatpush.msra.mxu0 0.0
        %298 = vmatpush.msra.mxu0 0.0
        %299 = vmatpush.msra.mxu0 0.0
        %300 = vmatpush.msra.mxu0 %v256
        %301 = vmatpush.msra.mxu0 %v254
        %302 = vmatpush.msra.mxu0 %v252
        %303 = vmatpush.msra.mxu0 %v250
        %304 = vmatpush.msra.mxu0 %v248
        %305 = vmatpush.msra.mxu0 %v246
        %306 = vmatpush.msra.mxu0 %v244
        %307 = vmatpush.msra.mxu0 %v242
        %308 = vmatpush.msra.mxu0 %v240
        %309 = vmatpush.msra.mxu0 %v238
        %310 = vmatmul.f32.gmra.mxu0 %v267
        %v311 = vpop.f32.mrf.mxu0
        %v312 = vadd.f32 0.0, %v311
        %313 = vmatmul.f32.gmra.mxu0 %v269
        %v314 = vpop.f32.mrf.mxu0
        %v315 = vadd.f32 0.0, %v314
        %316 = vdwg.mxu0
        %v317 = vsel %vm266, %v213, 0
        %v319 = vsel %vm266, %v214, 0
        %321 = vmatpush.msra.mxu0 0.0
        %322 = vmatpush.msra.mxu0 0.0
        %323 = vmatpush.msra.mxu0 0.0
        %324 = vmatpush.msra.mxu0 0.0
        %325 = vmatpush.msra.mxu0 0.0
        %326 = vmatpush.msra.mxu0 0.0
        %327 = vmatpush.msra.mxu0 %v234
        %328 = vmatpush.msra.mxu0 %v232
        %329 = vmatpush.msra.mxu0 %v230
        %330 = vmatpush.msra.mxu0 %v228
        %331 = vmatpush.msra.mxu0 %v226
        %332 = vmatpush.msra.mxu0 %v224
        %333 = vmatpush.msra.mxu0 %v222
        %334 = vmatpush.msra.mxu0 %v220
        %335 = vmatpush.msra.mxu0 %v218
        %336 = vmatpush.msra.mxu0 %v216
        %337 = vmatmul.f32.gmra.mxu0 %v317
        %v338 = vpop.f32.mrf.mxu0
        %v339 = vadd.f32 %v289, %v338
        %340 = vmatmul.f32.gmra.mxu0 %v319
        %v341 = vpop.f32.mrf.mxu0
        %v342 = vadd.f32 %v292, %v341
        %343 = vdwg.mxu0
        %344 = vmatpush.msra.mxu0 0.0
        %345 = vmatpush.msra.mxu0 0.0
        %346 = vmatpush.msra.mxu0 0.0
        %347 = vmatpush.msra.mxu0 0.0
        %348 = vmatpush.msra.mxu0 0.0
        %349 = vmatpush.msra.mxu0 0.0
        %350 = vmatpush.msra.mxu0 %v235
        %351 = vmatpush.msra.mxu0 %v233
        %352 = vmatpush.msra.mxu0 %v231
        %353 = vmatpush.msra.mxu0 %v229
        %354 = vmatpush.msra.mxu0 %v227
        %355 = vmatpush.msra.mxu0 %v225
        %356 = vmatpush.msra.mxu0 %v223
        %357 = vmatpush.msra.mxu0 %v221
        %358 = vmatpush.msra.mxu0 %v219
        %359 = vmatpush.msra.mxu0 %v217
        %360 = vmatmul.f32.gmra.mxu0 %v317
        %v361 = vpop.f32.mrf.mxu0
        %v362 = vadd.f32 %v312, %v361
        %363 = vmatmul.f32.gmra.mxu0 %v319
        %v364 = vpop.f32.mrf.mxu0
        %v365 = vadd.f32 %v315, %v364
        %366 = vdwg.mxu0
        %s367 = scalar_lea.vmem [#allocation2], 320
        %v368 = vld [vmem:[%s367] sm:$0xff]
        %v369 = vld [vmem:[%s367 + $0x8] sm:$0xff]
        %v370 = vld [vmem:[%s367 + $0x10] sm:$0xff]
        %v371 = vld [vmem:[%s367 + $0x18] sm:$0xff]
        %v372 = vld [vmem:[%s367 + $0x20] sm:$0xff]
        %v373 = vld [vmem:[%s367 + $0x28] sm:$0xff]
        %v374 = vld [vmem:[%s367 + $0x30] sm:$0xff]
        %v375 = vld [vmem:[%s367 + $0x38] sm:$0xff]
        %v376 = vld [vmem:[%s367 + $0x40] sm:$0xff]
        %v377 = vld [vmem:[%s367 + $0x48] sm:$0xff]
        %v378 = vld [vmem:[%s367 + $0x50] sm:$0xff]
        %v379 = vld [vmem:[%s367 + $0x58] sm:$0xff]
        %v380 = vld [vmem:[%s367 + $0x60] sm:$0xff]
        %v381 = vld [vmem:[%s367 + $0x68] sm:$0xff]
        %v382 = vld [vmem:[%s367 + $0x70] sm:$0xff]
        %v383 = vld [vmem:[%s367 + $0x78] sm:$0xff]
        %v384 = vld [vmem:[%s367 + $0x80] sm:$0xff]
        %v385 = vld [vmem:[%s367 + $0x88] sm:$0xff]
        %v386 = vld [vmem:[%s367 + $0x90] sm:$0xff]
        %v387 = vld [vmem:[%s367 + $0x98] sm:$0xff]
        %vm388 = vcmask 1045504
        %v389 = vrot.slane %v213, 2
        %v390 = vrot.slane %v214, 2
        %v391 = vsel %vm388, %v389, %v390
        %v392 = vrot.slane %v215, 2
        %v393 = vsel %vm388, %v390, %v392
        %v394 = vsel %vm266, %v391, 0
        %v396 = vsel %vm266, %v393, 0
        %398 = vmatpush.msra.mxu0 0.0
        %399 = vmatpush.msra.mxu0 0.0
        %400 = vmatpush.msra.mxu0 0.0
        %401 = vmatpush.msra.mxu0 0.0
        %402 = vmatpush.msra.mxu0 0.0
        %403 = vmatpush.msra.mxu0 0.0
        %404 = vmatpush.msra.mxu0 %v386
        %405 = vmatpush.msra.mxu0 %v384
        %406 = vmatpush.msra.mxu0 %v382
        %407 = vmatpush.msra.mxu0 %v380
        %408 = vmatpush.msra.mxu0 %v378
        %409 = vmatpush.msra.mxu0 %v376
        %410 = vmatpush.msra.mxu0 %v374
        %411 = vmatpush.msra.mxu0 %v372
        %412 = vmatpush.msra.mxu0 %v370
        %413 = vmatpush.msra.mxu0 %v368
        %414 = vmatmul.f32.gmra.mxu0 %v394
        %v415 = vpop.f32.mrf.mxu0
        %v416 = vadd.f32 0.0, %v415
        %417 = vmatmul.f32.gmra.mxu0 %v396
        %v418 = vpop.f32.mrf.mxu0
        %v419 = vadd.f32 0.0, %v418
        %420 = vdwg.mxu0
        %421 = vmatpush.msra.mxu0 0.0
        %422 = vmatpush.msra.mxu0 0.0
        %423 = vmatpush.msra.mxu0 0.0
        %424 = vmatpush.msra.mxu0 0.0
        %425 = vmatpush.msra.mxu0 0.0
        %426 = vmatpush.msra.mxu0 0.0
        %427 = vmatpush.msra.mxu0 %v387
        %428 = vmatpush.msra.mxu0 %v385
        %429 = vmatpush.msra.mxu0 %v383
        %430 = vmatpush.msra.mxu0 %v381
        %431 = vmatpush.msra.mxu0 %v379
        %432 = vmatpush.msra.mxu0 %v377
        %433 = vmatpush.msra.mxu0 %v375
        %434 = vmatpush.msra.mxu0 %v373
        %435 = vmatpush.msra.mxu0 %v371
        %436 = vmatpush.msra.mxu0 %v369
        %437 = vmatmul.f32.gmra.mxu0 %v394
        %v438 = vpop.f32.mrf.mxu0
        %v439 = vadd.f32 0.0, %v438
        %440 = vmatmul.f32.gmra.mxu0 %v396
        %v441 = vpop.f32.mrf.mxu0
        %v442 = vadd.f32 0.0, %v441
        %443 = vdwg.mxu0
        %v444 = vadd.f32 %v339, %v416
        %v445 = vadd.f32 %v362, %v439
        %v446 = vadd.f32 %v342, %v419
        %v447 = vadd.f32 %v365, %v442
        %v448 = vld [vmem:[%s2] sm:$0x3]
        %v450 = vperm.slane %v448, 0
        %v451 = vperm.slane %v448, 1
        %v454 = vadd.f32 %v444, %v450
        %v455 = vadd.f32 %v445, %v451
        %v456 = vadd.f32 %v446, %v450
        %v457 = vadd.f32 %v447, %v451
        %v458 = vld [vmem:[%s3] sm:$0xff]
        %v459 = vld [vmem:[%s3 + $0x8] sm:$0xff]
        %v460 = vld [vmem:[%s3 + $0x10] sm:$0xff]
        %v461 = vld [vmem:[%s3 + $0x18] sm:$0xff]
        %v462 = vadd.f32 %v454, %v458
        %v463 = vadd.f32 %v455, %v459
        %v464 = vadd.f32 %v456, %v460
        %v465 = vadd.f32 %v457, %v461
        %466 = vst [vmem:[%s207] sm:$0xff] %v462
        %467 = vst [vmem:[%s207 + $0x8] sm:$0xff] %v463
        %468 = vst [vmem:[%s207 + $0x10] sm:$0xff] %v464
        %469 = vst [vmem:[%s207 + $0x18] sm:$0xff] %v465
        %s470 = sand.u32 %s116, 1
        %s471 = scalar_lea.sflag [#allocation4], %s470
        %s472 = sand.u32 %s116, 1
        %s473 = smul.addr %s472, 32
        %s474 = scalar_lea.vmem [#allocation5], %s473
        // Predicated region
        $region41: #{tpu_custom_call.1} parent=35 // pred_check
          %p475 = pneg %p126
        $region42: #{tpu_custom_call.1} parent=35 // pred_check_branch
          %477 = sbr.rel (%p475) target = $region44
        $region43: #{tpu_custom_call.1} parent=35 // pred_region
          %479 = vsyncadd %s471, 0
          %s480 = smul.addr %s19, 4
          %s481 = smul.addr %s480, 8
          %s482 = scalar_lea.hbm %s4, %s481
          %s483 = sshll.u32 %s474, 4
          %s484 = int_to_ptr.vmem [resolvable:$true] %s483
          %s485 = sshll.u32 %s482, 4
          %s486 = int_to_ptr.hbm [resolvable:$true] %s485
          %491 = dma.vmem_to_hbm [thread:$0]  %s484, 512, %s486, %s471, 256, 256, 16
        $region44: #{tpu_custom_call.1} parent=35 // pred_fallthru
          _
      $region36: #{tpu_custom_call.1} parent=5 // pred_fallthru
        _
      %p492 = scmp.le.s32.totalorder 2, %s14
      // Predicated region
      $region45: #{tpu_custom_call.1} parent=5 // pred_check
        %p493 = pneg %p492
      $region46: #{tpu_custom_call.1} parent=5 // pred_check_branch
        %495 = sbr.rel (%p493) target = $region48
      $region47: #{tpu_custom_call.1} parent=5 // pred_region
        %s496 = ssub.s32 %s14, 2
        // Predicated region
        $region49: #{tpu_custom_call.1} parent=47 // pred_check
          %p497 = pneg %p132
        $region50: #{tpu_custom_call.1} parent=47 // pred_check_branch
          %499 = sbr.rel (%p497) target = $region52
        $region51: #{tpu_custom_call.1} parent=47 // pred_region
          %s500 = sand.u32 %s117, 1
          %s501 = scalar_lea.sflag [#allocation4], %s500
          %s502 = sand.u32 %s117, 1
          %s503 = smul.addr %s502, 32
          %s504 = scalar_lea.vmem [#allocation5], %s503
          %506 = dma.done %s501, 512
        $region52: #{tpu_custom_call.1} parent=47 // pred_fallthru
          _
      $region48: #{tpu_custom_call.1} parent=5 // pred_fallthru
        _
    $region6: #{tpu_custom_call.1} parent=1 // loop_footer
      %s18 = sadd.s32 1, %s14
    $region7: #{tpu_custom_call.1} parent=1 // loop_footer_branch
      %13 = sbr.rel target = $region3
    $region8: #{tpu_custom_call.1} parent=1 // loop_exit
      _
    %507 = vsyncpa [#allocation3], 1
    %s508 = scalar_lea.sflag [#allocation3], 1
    %509 = vsyncpa %s508, 1
    %510 = vsyncpa [#allocation4], 1
    %s511 = scalar_lea.sflag [#allocation4], 1
    %512 = vsyncpa %s511, 1

</llo_original>
